<compile_context>
chip_gen: v5e
topology: v5e:2x2
jax: 0.10.0
libtpu: 0.0.40
codegen_flags: <defaults>
</compile_context>

<pallas_src>
import functools

import jax
import jax.numpy as jnp
from jax.experimental import pallas as pl
from jax.experimental.pallas import tpu as pltpu


def _downsample_kernel(x_ref, o_ref, *, c_in, c_out):
    # x_ref: (TH, wo, 2*c_in) -- even input rows; lanes pack
    #        [even-column channels | odd-column channels] per output pixel.
    # o_ref: (TH, wo, c_out)
    c_keep = min(c_in, c_out)
    x = x_ref[:, :, :c_keep]                 # even column + channel truncation (contiguous lanes)
    if c_out > c_in:
        o_ref[...] = jnp.zeros(o_ref.shape, o_ref.dtype)   # zero-fill tile once
        o_ref[:, :, :c_keep] = x                            # sub-slice store (no concat)
    else:
        o_ref[...] = x


def _round_up(v, m):
    return (v + m - 1) // m * m


def _pick_row_tile(ho, wo, c_in, c_out, itemsize, budget_bytes=2 << 20):
    # VMEM footprint per output row (last two dims padded to (8, 128) tiles).
    row_in = _round_up(wo, 8) * _round_up(2 * c_in, 128) * itemsize
    row_out = _round_up(wo, 8) * _round_up(c_out, 128) * itemsize
    per_row = max(row_in, row_out)
    th = max(1, min(ho, budget_bytes // per_row))
    while ho % th:                            # keep the grid exact
        th -= 1
    return th


def prunable_downsample_a(x_nchw, out_channels):
    """Forward pass of PrunableDownsampleA. Takes/returns NCHW like PyTorch."""
    n, c_in, h, w = x_nchw.shape
    ho = (h - 1) // 2 + 1
    wo = (w - 1) // 2 + 1

    x = jnp.transpose(x_nchw, (0, 2, 3, 1))                  # glue: NCHW -> NHWC
    if h % 2:                                                 # pad to even H/W only if needed;
        x = jnp.pad(x, ((0, 0), (0, 1), (0, 0), (0, 0)))      # padded values land on odd
    if w % 2:                                                 # indices and are dropped.
        x = jnp.pad(x, ((0, 0), (0, 0), (0, 1), (0, 0)))
    # Free contiguous reshape: split H -> (ho, 2), fold the W parity pair into
    # the lane axis.  Shape: (n, ho, 2, wo, 2*c_in).
    x = x.reshape(n, ho, 2, wo, 2 * c_in)

    itemsize = jnp.dtype(x_nchw.dtype).itemsize
    th = _pick_row_tile(ho, wo, c_in, out_channels, itemsize)

    kernel = functools.partial(_downsample_kernel, c_in=c_in, c_out=out_channels)

    cost = pl.CostEstimate(
        flops=0,
        transcendentals=0,
        bytes_accessed=n * ho * wo * (2 * c_in + out_channels) * itemsize)

    out_nhwc = pl.pallas_call(
        kernel,
        out_shape=jax.ShapeDtypeStruct((n, ho, wo, out_channels), x_nchw.dtype),
        grid=(n, ho // th),
        in_specs=[
            # TH even rows per step; H-pair axis squeezed & pinned to 0 so odd
            # rows are never read from HBM.
            pl.BlockSpec((None, th, None, wo, 2 * c_in),
                         lambda b, i: (b, i, 0, 0, 0)),
        ],
        out_specs=pl.BlockSpec((None, th, wo, out_channels),
                               lambda b, i: (b, i, 0, 0)),
        compiler_params=pltpu.CompilerParams(
            dimension_semantics=("parallel", "parallel"),
            vmem_limit_bytes=32 << 20),
        cost_estimate=cost,
    )(x)

    return jnp.transpose(out_nhwc, (0, 3, 1, 2))              # glue: NHWC -> NCHW


def _reference(x_nchw, out_channels):
    y = x_nchw[:, :, ::2, ::2]
    c_in = y.shape[1]
    if c_in < out_channels:
        pad = jnp.zeros((y.shape[0], out_channels - c_in, y.shape[2], y.shape[3]),
                        dtype=y.dtype)
        return jnp.concatenate([y, pad], axis=1)
    return y[:, :out_channels]


if __name__ == "__main__":
    key = jax.random.PRNGKey(0)
    x = jax.random.normal(key, (2, 4, 16, 16), dtype=jnp.float32)

    # pad case: out_channels > in_channels
    out_pad = jax.block_until_ready(prunable_downsample_a(x, 6))
    ref_pad = _reference(x, 6)
    assert out_pad.shape == (2, 6, 8, 8), out_pad.shape
    assert jnp.allclose(out_pad, ref_pad, atol=1e-6), "pad case mismatch"

    # truncate case: out_channels < in_channels
    out_trunc = jax.block_until_ready(prunable_downsample_a(x, 3))
    ref_trunc = _reference(x, 3)
    assert out_trunc.shape == (2, 3, 8, 8), out_trunc.shape
    assert jnp.allclose(out_trunc, ref_trunc, atol=1e-6), "truncate case mismatch"

    # pass-through channels + odd spatial dims
    x2 = jax.random.normal(jax.random.PRNGKey(0), (2, 4, 15, 9), dtype=jnp.float32)
    out_eq = jax.block_until_ready(prunable_downsample_a(x2, 4))
    assert out_eq.shape == (2, 4, 8, 5), out_eq.shape
    assert jnp.allclose(out_eq, _reference(x2, 4), atol=1e-6), "odd-shape case mismatch"

    print("KERNEL_OK")
</pallas_src>

<mosaic_0001>
module attributes {stable_mosaic.version = 11 : i64} {
  func.func @_downsample_kernel(%arg0: i32, %arg1: i32, %arg2: memref<1x8x1x8x8xf32, #tpu.memory_space<vmem>>, %arg3: memref<1x8x8x6xf32, #tpu.memory_space<vmem>>) attributes {dimension_semantics = [#tpu.dimension_semantics<parallel>, #tpu.dimension_semantics<parallel>], iteration_bounds = array<i64: 2, 1>, scalar_prefetch = 0 : i64, scratch_operands = 0 : i64, tpu.core_type = #tpu.core_type<tc>, window_params = [{transform_indices = @transform_0, window_bounds = array<i64: 1, 8, 1, 8, 8>}, {transform_indices = @transform_1, window_bounds = array<i64: 1, 8, 8, 6>}]} {
    %c0 = arith.constant 0 : index
    %c0_0 = arith.constant 0 : index
    %c0_1 = arith.constant 0 : index
    %c0_2 = arith.constant 0 : index
    %c0_3 = arith.constant 0 : index
    %0 = vector.load %arg2[%c0, %c0_0, %c0_1, %c0_2, %c0_3] : memref<1x8x1x8x8xf32, #tpu.memory_space<vmem>>, vector<1x8x1x8x4xf32>
    %1 = vector.shape_cast %0 : vector<1x8x1x8x4xf32> to vector<8x8x4xf32>
    %cst = arith.constant 0.000000e+00 : f32
    %2 = vector.broadcast %cst : f32 to vector<8x8x6xf32>
    %c0_4 = arith.constant 0 : index
    %c0_5 = arith.constant 0 : index
    %c0_6 = arith.constant 0 : index
    %c0_7 = arith.constant 0 : index
    %3 = vector.load %arg3[%c0_4, %c0_5, %c0_6, %c0_7] : memref<1x8x8x6xf32, #tpu.memory_space<vmem>>, vector<1x8x8x6xf32>
    %4 = vector.shape_cast %3 : vector<1x8x8x6xf32> to vector<8x8x6xf32>
    %5 = vector.shape_cast %2 : vector<8x8x6xf32> to vector<1x8x8x6xf32>
    tpu.vector_store %arg3[%c0_4, %c0_5, %c0_6, %c0_7], %5 {strides = array<i32>} : memref<1x8x8x6xf32, #tpu.memory_space<vmem>>, vector<1x8x8x6xf32>,
    %c0_8 = arith.constant 0 : index
    %c0_9 = arith.constant 0 : index
    %c0_10 = arith.constant 0 : index
    %c0_11 = arith.constant 0 : index
    %6 = vector.load %arg3[%c0_8, %c0_9, %c0_10, %c0_11] : memref<1x8x8x6xf32, #tpu.memory_space<vmem>>, vector<1x8x8x4xf32>
    %7 = vector.shape_cast %6 : vector<1x8x8x4xf32> to vector<8x8x4xf32>
    %8 = vector.shape_cast %1 : vector<8x8x4xf32> to vector<1x8x8x4xf32>
    tpu.vector_store %arg3[%c0_8, %c0_9, %c0_10, %c0_11], %8 {strides = array<i32>} : memref<1x8x8x6xf32, #tpu.memory_space<vmem>>, vector<1x8x8x4xf32>,
    return
  }
  func.func @transform_0(%arg0: i32, %arg1: i32) -> (i32, i32, i32, i32, i32) {
    %c0_i32 = arith.constant 0 : i32
    %c0_i32_0 = arith.constant 0 : i32
    %c0_i32_1 = arith.constant 0 : i32
    %c0_i32_2 = arith.constant 0 : i32
    return %arg0, %arg1, %c0_i32, %c0_i32_0, %c0_i32_1 : i32, i32, i32, i32, i32
  }
  func.func @transform_1(%arg0: i32, %arg1: i32) -> (i32, i32, i32, i32) {
    %c0_i32 = arith.constant 0 : i32
    %c0_i32_0 = arith.constant 0 : i32
    %c0_i32_1 = arith.constant 0 : i32
    return %arg0, %arg1, %c0_i32, %c0_i32_0 : i32, i32, i32, i32
  }
}

</mosaic_0001>

<llo_original>
// kernel: tpu_custom_call.1
$region0: #{tpu_custom_call.1}
  #allocation0 [shape = 'u32[]', space=smem, size = 0x4, offset = 0x4, fixed_abs, tag = 'smem constant byte address 0x4 - core index']
  #allocation1 [shape = 'u32[72,128]{1,0:T(1,128)}', space=vmem, size = 0x9000, scoped, tag = 'internal scratch']
  %s0 = inlined_call_operand.hbm [shape: f32[2,8,2,8,8], index: 0, kind: input, shape index: {}]
  %s1 = inlined_call_operand.vmem [shape: f32[2,8,8,6], index: 1, kind: output, shape index: {}]
  %s2 = sld [smem:[#allocation0]]
  $region41: #{tpu_custom_call.1} parent=0
    _
  %s4 = ssub.s32 1, %s2
  %s5 = scalar_select 0, %s4, %s2
  $region1: #{tpu_custom_call.1} parent=0
    #allocation2 [shape = 'u8[65536]{0}', space=vmem, size = 0x10000, scoped, tag = 'input window, operand 0']
    #allocation3 [shape = 's32[2]{0}', space=sflag, size = 0x8, scoped, tag = 'scoped memory for tpu_custom_call.1']
    %6 = vsyncpa [#allocation3], 0
    %s7 = scalar_lea.sflag [#allocation3], 1
    %8 = vsyncpa %s7, 0
    loop: start=0, step=1, limit=4
    $region2: #{tpu_custom_call.1} parent=1 // loop_pre_header
      _
    $region3: #{tpu_custom_call.1} parent=1 // loop_header
      %s10 = sphi 0, %s14
      %p11 = scmp.ge.s32.totalorder %s10, 4
      %s17 = sphi 0, %s29
      %s18 = sphi 0, %s25
      %s19 = sphi 0, %s17
      %s20 = sphi 0, %s18
      %s21 = sphi 0, %s19
      %s22 = sphi 0, %s20
      %s34 = sphi 0, %s36
      %s37 = sphi 0, %s34
      %s38 = sphi 0, %s37
      %s54 = sphi 0, %s38
      %s62 = sphi 0, %s64
      %s65 = sphi 0, %s62
      %s66 = sphi 0, %s65
      %s82 = sphi 0, %s66
    $region4: #{tpu_custom_call.1} parent=1 // loop_header_branch
      %13 = sbr.rel (%p11) target = $region8
    $region5: #{tpu_custom_call.1} parent=1 // loop_body
      %s15 = ssub.s32 %s10, 1
      %s16 = ssub.s32 %s10, 2
      %s23 = sadd.s32 1, %s18
      %p24 = scmp.ge.s32.totalorder %s23, 1
      %s25 = scalar_select %p24, 0, %s23
      %s26 = sadd.s32 1, %s17
      %s27 = scalar_select %p24, %s26, %s17
      %p28 = scmp.ge.s32.totalorder %s27, 2
      %s29 = scalar_select %p28, 0, %s27
      %s30 = ssub.s32 %s17, %s29
      %s31 = ssub.s32 %s18, %s25
      %s32 = sor.u32 %s30, %s31
      %p33 = scmp.eq.s32.totalorder %s32, 0
      %s35 = sadd.s32 %s34, 1
      %s36 = scalar_select %p33, %s34, %s35
      %p39 = pneg %p33
      %p40 = scmp.eq.s32.totalorder %s10, 1
      %p41 = por %p39, %p40
      %p42 = scmp.ne.s32.totalorder %s34, %s37
      %p43 = scmp.eq.s32.totalorder %s10, 0
      %p44 = por %p42, %p43
      %p45 = scmp.ne.s32.totalorder %s34, %s37
      %p46 = scmp.eq.s32.totalorder %s15, 1
      %p47 = por %p45, %p46
      %p48 = scmp.ne.s32.totalorder %s37, %s38
      %p49 = scmp.eq.s32.totalorder %s15, 0
      %p50 = por %p48, %p49
      %p51 = scmp.ne.s32.totalorder %s37, %s38
      %p52 = scmp.eq.s32.totalorder %s16, 1
      %p53 = por %p51, %p52
      %p55 = scmp.ne.s32.totalorder %s38, %s54
      %p56 = scmp.eq.s32.totalorder %s16, 0
      %p57 = por %p55, %p56
      %s58 = ssub.s32 %s17, %s29
      %s59 = ssub.s32 %s18, %s25
      %s60 = sor.u32 %s58, %s59
      %p61 = scmp.eq.s32.totalorder %s60, 0
      %s63 = sadd.s32 %s62, 1
      %s64 = scalar_select %p61, %s62, %s63
      %p67 = pneg %p61
      %p68 = scmp.eq.s32.totalorder %s10, 1
      %p69 = por %p67, %p68
      %p70 = scmp.ne.s32.totalorder %s62, %s65
      %p71 = scmp.eq.s32.totalorder %s10, 0
      %p72 = por %p70, %p71
      %p73 = scmp.ne.s32.totalorder %s62, %s65
      %p74 = scmp.eq.s32.totalorder %s15, 1
      %p75 = por %p73, %p74
      %p76 = scmp.ne.s32.totalorder %s65, %s66
      %p77 = scmp.eq.s32.totalorder %s15, 0
      %p78 = por %p76, %p77
      %p79 = scmp.ne.s32.totalorder %s65, %s66
      %p80 = scmp.eq.s32.totalorder %s16, 1
      %p81 = por %p79, %p80
      %p83 = scmp.ne.s32.totalorder %s66, %s82
      %p84 = scmp.eq.s32.totalorder %s16, 0
      %p85 = por %p83, %p84
      %p86 = scmp.le.s32.totalorder 1, %s10
      %p87 = scmp.lt.s32.totalorder %s10, 3
      %p88 = pnand %p86, %p87
      %p89 = pneg %p88
      // Predicated region
      $region9: #{tpu_custom_call.1} parent=5 // pred_check
        _
      $region10: #{tpu_custom_call.1} parent=5 // pred_check_branch
        %91 = sbr.rel (%p88) target = $region12
      $region11: #{tpu_custom_call.1} parent=5 // pred_region
        %s92 = ssub.s32 %s10, 1
      $region12: #{tpu_custom_call.1} parent=5 // pred_fallthru
        _
      %p93 = scmp.lt.s32.totalorder %s10, 2
      // Predicated region
      $region13: #{tpu_custom_call.1} parent=5 // pred_check
        %p94 = pneg %p93
      $region14: #{tpu_custom_call.1} parent=5 // pred_check_branch
        %96 = sbr.rel (%p94) target = $region16
      $region15: #{tpu_custom_call.1} parent=5 // pred_region
        // Predicated region
        $region17: #{tpu_custom_call.1} parent=15 // pred_check
          %p97 = pneg %p44
        $region18: #{tpu_custom_call.1} parent=15 // pred_check_branch
          %99 = sbr.rel (%p97) target = $region20
        $region19: #{tpu_custom_call.1} parent=15 // pred_region
          %s100 = sand.u32 %s34, 1
          %s101 = scalar_lea.sflag [#allocation3], %s100
          %s102 = sand.u32 %s34, 1
          %s103 = smul.addr %s102, 64
          %s104 = scalar_lea.vmem [#allocation2], %s103
          %s105 = smul.u32 8, %s18
          %107 = vsyncadd %s101, 0
          %s108 = smul.addr %s105, 2
          %s109 = smul.addr %s17, 16
          %s110 = sadd.s32 %s108, %s109
          %s111 = smul.addr %s110, 8
          %s112 = scalar_lea.hbm %s0, %s111
          %s113 = sshll.u32 %s112, 4
          %s114 = int_to_ptr.hbm [resolvable:$true] %s113
          %s115 = sshll.u32 %s104, 4
          %s116 = int_to_ptr.vmem [resolvable:$true] %s115
          %121 = dma.hbm_to_vmem [thread:$0]  %s114, 1024, %s116, %s101, 256, 128, 8
        $region20: #{tpu_custom_call.1} parent=15 // pred_fallthru
          _
      $region16: #{tpu_custom_call.1} parent=5 // pred_fallthru
        _
      %p122 = scmp.le.s32.totalorder 1, %s10
      %p123 = scmp.lt.s32.totalorder %s10, 3
      %p124 = pnand %p122, %p123
      %p125 = pneg %p124
      // Predicated region
      $region21: #{tpu_custom_call.1} parent=5 // pred_check
        _
      $region22: #{tpu_custom_call.1} parent=5 // pred_check_branch
        %127 = sbr.rel (%p124) target = $region24
      $region23: #{tpu_custom_call.1} parent=5 // pred_region
        %s128 = ssub.s32 %s10, 1
        %s129 = sand.u32 %s37, 1
        %s130 = scalar_lea.sflag [#allocation3], %s129
        %s131 = sand.u32 %s37, 1
        %s132 = smul.addr %s131, 64
        %s133 = scalar_lea.vmem [#allocation2], %s132
        // Predicated region
        $region25: #{tpu_custom_call.1} parent=23 // pred_check
          %p134 = pneg %p50
        $region26: #{tpu_custom_call.1} parent=23 // pred_check_branch
          %136 = sbr.rel (%p134) target = $region28
        $region27: #{tpu_custom_call.1} parent=23 // pred_region
          %138 = dma.done %s130, 1024
        $region28: #{tpu_custom_call.1} parent=23 // pred_fallthru
          _
        %s139 = sand.u32 %s37, 1
        %s140 = scalar_lea.sflag [#allocation3], %s139
        %s141 = sand.u32 %s37, 1
        %s142 = smul.addr %s141, 64
        %s143 = scalar_lea.vmem [#allocation2], %s142
        %p144 = pneg %p50
        %p145 = pneg %p47
        %p146 = pneg %p78
        %p147 = pneg %p75
        %s148 = smul.u32 8, %s20
        %p149 = scmp.lt.s32.totalorder %s19, 1
        %s150 = scalar_select %p149, %s19, 1
        %p151 = scmp.lt.s32.totalorder %s148, 7
        %s152 = scalar_select %p151, %s148, 7
        %s153 = smul.addr %s150, 8
        %s154 = sadd.s32 %s152, %s153
        %s155 = smul.addr %s154, 8
        %s156 = scalar_lea.vmem %s1, %s155
        %s157 = smul.u32 8, %s20
        %s158 = smul.u32 8, %s20
        %p159 = scmp.lt.s32.totalorder %s19, 1
        %s160 = scalar_select %p159, %s19, 1
        %p161 = scmp.lt.s32.totalorder %s158, 7
        %s162 = scalar_select %p161, %s158, 7
        %s163 = smul.addr %s160, 8
        %s164 = sadd.s32 %s162, %s163
        %s165 = smul.addr %s164, 8
        %s166 = scalar_lea.vmem %s1, %s165
        %s167 = smul.u32 8, %s20
        %v168 = vld [vmem:[%s133] sm:$0xff]
        %v169 = vld [vmem:[%s133 + $0x8] sm:$0xff]
        %v170 = vld [vmem:[%s133 + $0x10] sm:$0xff]
        %v171 = vld [vmem:[%s133 + $0x18] sm:$0xff]
        %v172 = vld [vmem:[%s133 + $0x20] sm:$0xff]
        %v173 = vld [vmem:[%s133 + $0x28] sm:$0xff]
        %v174 = vld [vmem:[%s133 + $0x30] sm:$0xff]
        %v175 = vld [vmem:[%s133 + $0x38] sm:$0xff]
        %vm176 = vcmask 48128
        %177 = vst.msk [vmem:[%s166] sm:$0xff] %vm176, 0.0
        %178 = vst.msk [vmem:[%s166 + $0x8] sm:$0xff] %vm176, 0.0
        %179 = vst.msk [vmem:[%s166 + $0x10] sm:$0xff] %vm176, 0.0
        %180 = vst.msk [vmem:[%s166 + $0x18] sm:$0xff] %vm176, 0.0
        %181 = vst.msk [vmem:[%s166 + $0x20] sm:$0xff] %vm176, 0.0
        %182 = vst.msk [vmem:[%s166 + $0x28] sm:$0xff] %vm176, 0.0
        %183 = vst.msk [vmem:[%s166 + $0x30] sm:$0xff] %vm176, 0.0
        %184 = vst.msk [vmem:[%s166 + $0x38] sm:$0xff] %vm176, 0.0
        %vm185 = vcmask 31744
        %186 = vst.msk [vmem:[%s166] sm:$0xff] %vm185, %v168
        %187 = vst.msk [vmem:[%s166 + $0x8] sm:$0xff] %vm185, %v169
        %188 = vst.msk [vmem:[%s166 + $0x10] sm:$0xff] %vm185, %v170
        %189 = vst.msk [vmem:[%s166 + $0x18] sm:$0xff] %vm185, %v171
        %190 = vst.msk [vmem:[%s166 + $0x20] sm:$0xff] %vm185, %v172
        %191 = vst.msk [vmem:[%s166 + $0x28] sm:$0xff] %vm185, %v173
        %192 = vst.msk [vmem:[%s166 + $0x30] sm:$0xff] %vm185, %v174
        %193 = vst.msk [vmem:[%s166 + $0x38] sm:$0xff] %vm185, %v175
        %s194 = smul.u32 8, %s20
        %p195 = scmp.lt.s32.totalorder %s19, 1
        %s196 = scalar_select %p195, %s19, 1
        %p197 = scmp.lt.s32.totalorder %s194, 7
        %s198 = scalar_select %p197, %s194, 7
        %s199 = smul.addr %s196, 8
        %s200 = sadd.s32 %s198, %s199
        %s201 = smul.addr %s200, 8
        %s202 = scalar_lea.vmem %s1, %s201
        // Predicated region
        $region29: #{tpu_custom_call.1} parent=23 // pred_check
          %p203 = pneg %p75
        $region30: #{tpu_custom_call.1} parent=23 // pred_check_branch
          %205 = sbr.rel (%p203) target = $region32
        $region31: #{tpu_custom_call.1} parent=23 // pred_region
          %s206 = smul.u32 8, %s20
        $region32: #{tpu_custom_call.1} parent=23 // pred_fallthru
          _
      $region24: #{tpu_custom_call.1} parent=5 // pred_fallthru
        _
      %p207 = scmp.le.s32.totalorder 2, %s10
      // Predicated region
      $region33: #{tpu_custom_call.1} parent=5 // pred_check
        %p208 = pneg %p207
      $region34: #{tpu_custom_call.1} parent=5 // pred_check_branch
        %210 = sbr.rel (%p208) target = $region36
      $region35: #{tpu_custom_call.1} parent=5 // pred_region
        %s211 = ssub.s32 %s10, 2
        // Predicated region
        $region37: #{tpu_custom_call.1} parent=35 // pred_check
          %p212 = pneg %p81
        $region38: #{tpu_custom_call.1} parent=35 // pred_check_branch
          %214 = sbr.rel (%p212) target = $region40
        $region39: #{tpu_custom_call.1} parent=35 // pred_region
          %s215 = smul.u32 8, %s22
          %p216 = scmp.lt.s32.totalorder %s21, 1
          %s217 = scalar_select %p216, %s21, 1
          %p218 = scmp.lt.s32.totalorder %s215, 7
          %s219 = scalar_select %p218, %s215, 7
          %s220 = smul.addr %s217, 8
          %s221 = sadd.s32 %s219, %s220
          %s222 = smul.addr %s221, 8
          %s223 = scalar_lea.vmem %s1, %s222
        $region40: #{tpu_custom_call.1} parent=35 // pred_fallthru
          _
      $region36: #{tpu_custom_call.1} parent=5 // pred_fallthru
        _
    $region6: #{tpu_custom_call.1} parent=1 // loop_footer
      %s14 = sadd.s32 1, %s10
    $region7: #{tpu_custom_call.1} parent=1 // loop_footer_branch
      %9 = sbr.rel target = $region3
    $region8: #{tpu_custom_call.1} parent=1 // loop_exit
      _
    %224 = vsyncpa [#allocation3], 1
    %s225 = scalar_lea.sflag [#allocation3], 1
    %226 = vsyncpa %s225, 1

</llo_original>
